<compile_context>
chip_gen: v7x
topology: tpu7x:2x2x1
jax: 0.10.0
libtpu: 0.0.40
codegen_flags: <defaults>
</compile_context>

<pallas_src>
import functools

import jax
import jax.numpy as jnp
from jax import lax
from jax.experimental import pallas as pl
from jax.experimental.pallas import tpu as pltpu


# ---------------------------------------------------------------------------
# Small helpers
# ---------------------------------------------------------------------------
def _round_up(n, m):
    return ((n + m - 1) // m) * m


def _largest_divisor_leq(n, target):
    for d in range(min(n, target), 0, -1):
        if n % d == 0:
            return d
    return 1


def _vmem_limit(need_bytes):
    # Actual need + 50% headroom, clamped to [32 MiB, 128 MiB].
    return int(min(max(need_bytes + need_bytes // 2, 32 * 1024 * 1024),
                   128 * 1024 * 1024))


def _invariant_spec(block_shape, single_buffer):
    """BlockSpec for a grid-invariant operand; single-buffered when supported."""
    index_map = lambda *_: (0,) * len(block_shape)
    if single_buffer:
        return pl.BlockSpec(block_shape, index_map, pipeline_mode=pl.Buffered(1))
    return pl.BlockSpec(block_shape, index_map)


def _run_with_single_buffer_fallback(build_and_call):
    # pipeline_mode=pl.Buffered(1) saves one copy of every invariant weight in VMEM;
    # fall back to default double buffering if this Pallas build rejects it.
    try:
        return build_and_call(True)
    except Exception:
        return build_and_call(False)


# ---------------------------------------------------------------------------
# Stage 1: hoisted input projection  gates_x = x @ W_ih^T + b   (parallel)
# ---------------------------------------------------------------------------
def _input_proj_kernel(x_ref, wih_ref, b_ref, gx_ref):
    wih = wih_ref[...]
    b_blk, t_blk, d_in = x_ref.shape
    g4 = gx_ref.shape[-1]
    # (B,T,D) -> (T,B,D) reorder in VMEM (XLU), no HBM round-trip in the wrapper.
    x_tb = jnp.swapaxes(x_ref[...], 0, 1).astype(wih.dtype)
    g = jnp.dot(x_tb.reshape(t_blk * b_blk, d_in), wih,
                preferred_element_type=jnp.float32) + b_ref[...]
    gx_ref[...] = g.reshape(t_blk, b_blk, g4).astype(gx_ref.dtype)


# ---------------------------------------------------------------------------
# Stage 2: serial recurrence over T-chunks (h/c in persistent scratch) + FC head
# ---------------------------------------------------------------------------
def _recurrent_kernel(gx_ref, whh_ref, wfc_ref, bfc_ref, out_ref, h_ref, c_ref, *,
                      hidden_pad, t_chunk, unroll):
    t_idx = pl.program_id(1)

    @pl.when(t_idx == 0)
    def _init():
        h_ref[...] = jnp.zeros_like(h_ref)
        c_ref[...] = jnp.zeros_like(c_ref)

    H = hidden_pad
    whh = whh_ref[...]                        # (H_pad, 4*H_pad), resident for the chunk
    mm_dtype = whh.dtype

    def step(t, carry):
        h, c = carry
        # gates_x for this timestep was precomputed; only the recurrent matmul remains.
        gates = gx_ref[t].astype(jnp.float32) + jnp.dot(
            h.astype(mm_dtype), whh, preferred_element_type=jnp.float32)
        # Columns permuted to (i, f, o, g): one contiguous sigmoid slab + one tanh;
        # H_pad is a multiple of 128 so every slice is lane-aligned.
        sig = jax.nn.sigmoid(gates[:, :3 * H])
        g_g = jnp.tanh(gates[:, 3 * H:])
        i_g = sig[:, :H]
        f_g = sig[:, H:2 * H]
        o_g = sig[:, 2 * H:3 * H]
        c_new = f_g * c + i_g * g_g
        h_new = o_g * jnp.tanh(c_new)          # tanh(c_new) computed once, reused
        return h_new, c_new

    h, c = lax.fori_loop(0, t_chunk, step, (h_ref[...], c_ref[...]), unroll=unroll)
    h_ref[...] = h
    c_ref[...] = c

    @pl.when(t_idx == pl.num_programs(1) - 1)
    def _finalize():
        # Fused fully-connected head on the final hidden state (lane-dense O_pad).
        out_ref[...] = (jnp.dot(h, wfc_ref[...], preferred_element_type=jnp.float32)
                        + bfc_ref[...]).astype(out_ref.dtype)


# ---------------------------------------------------------------------------
# One-time parameter preparation (hoisted out of the forward pass)
# ---------------------------------------------------------------------------
def prepare_params(params, *, matmul_dtype=jnp.float32):
    """Permute gates (i,f,g,o)->(i,f,o,g), pad H/O to 128-lane multiples, transpose,
    fuse biases, cast matmul operands.  Call once; reuse across forward calls.

    matmul_dtype=jnp.bfloat16 is recommended on v6e/v7x at production sizes
    (accumulation stays f32 via preferred_element_type); the padded hidden features
    are exactly zero by construction, so padding does not change the math.
    """
    w_ih, w_hh = params["w_ih"], params["w_hh"]
    b_ih, b_hh = params["b_ih"], params["b_hh"]
    w_fc, b_fc = params["w_fc"], params["b_fc"]

    H = w_hh.shape[1]
    D_in = w_ih.shape[1]
    O = w_fc.shape[0]
    H_pad = _round_up(H, 128)
    O_pad = _round_up(O, 128)

    def permute_and_pad(w, col_pad):
        i, f, g, o = jnp.split(w, 4, axis=0)        # PyTorch gate order (i, f, g, o)
        gates = [i, f, o, g]                        # -> (i, f, o, g)
        if w.ndim == 1:
            gates = [jnp.pad(x, (0, H_pad - H)) for x in gates]
        else:
            gates = [jnp.pad(x, ((0, H_pad - H), (0, col_pad))) for x in gates]
        return jnp.concatenate(gates, axis=0)

    wih_p = permute_and_pad(w_ih, 0)                               # (4*H_pad, D_in)
    whh_p = permute_and_pad(w_hh, H_pad - H)                       # (4*H_pad, H_pad)
    bias_p = permute_and_pad(b_ih + b_hh, 0).reshape(1, 4 * H_pad)

    return {
        "wih_t": jnp.transpose(wih_p).astype(matmul_dtype),        # (D_in, 4*H_pad)
        "whh_t": jnp.transpose(whh_p).astype(matmul_dtype),        # (H_pad, 4*H_pad)
        "bias": bias_p.astype(jnp.float32),                        # (1, 4*H_pad)
        "wfc_t": jnp.transpose(
            jnp.pad(w_fc, ((0, O_pad - O), (0, H_pad - H)))).astype(jnp.float32),
        "bfc": jnp.pad(b_fc, (0, O_pad - O)).reshape(1, O_pad).astype(jnp.float32),
        "dims": {"H": H, "H_pad": H_pad, "O": O, "O_pad": O_pad, "D_in": D_in},
    }


# ---------------------------------------------------------------------------
# Forward pass
# ---------------------------------------------------------------------------
def simple_lstm_forward(x, prepped, *, gates_dtype=jnp.float32):
    """x: (B, T, input_size) float32.  Returns (B, output_size) float32.

    gates_dtype=jnp.bfloat16 halves the gates_x HBM round-trip (useful on v5e).
    """
    wih_t, whh_t = prepped["wih_t"], prepped["whh_t"]
    bias, wfc_t, bfc = prepped["bias"], prepped["wfc_t"], prepped["bfc"]
    dims = prepped["dims"]
    H_pad, O_pad, O, D_in = dims["H_pad"], dims["O_pad"], dims["O"], dims["D_in"]
    G4 = 4 * H_pad

    B, T, _ = x.shape
    B_pad = _round_up(B, 8)
    if B_pad != B:
        # Small, deterministic batch pad (zeros).  The time-major reorder is done
        # inside Stage 1; no transposed HBM copy of x is ever built.
        x = jnp.pad(x, ((0, B_pad - B), (0, 0), (0, 0)))

    x_bytes = jnp.dtype(x.dtype).itemsize
    w_bytes = jnp.dtype(wih_t.dtype).itemsize
    g_bytes = jnp.dtype(gates_dtype).itemsize

    # --------------- Stage 1: input projection (parallel 2-D grid) -----------
    T_BLK = min(T, 32) if T % 8 == 0 else T
    B_BLK = min(B_pad, 128)
    need1 = (2 * B_BLK * T_BLK * D_in * x_bytes + 2 * D_in * G4 * w_bytes
             + 2 * G4 * 4 + 2 * T_BLK * B_BLK * G4 * g_bytes)

    def stage1(single_buffer):
        return pl.pallas_call(
            _input_proj_kernel,
            out_shape=jax.ShapeDtypeStruct((T, B_pad, G4), gates_dtype),
            grid=(pl.cdiv(T, T_BLK), pl.cdiv(B_pad, B_BLK)),
            in_specs=[
                pl.BlockSpec((B_BLK, T_BLK, D_in), lambda t, b: (b, t, 0)),
                _invariant_spec((D_in, G4), single_buffer),
                _invariant_spec((1, G4), single_buffer),
            ],
            out_specs=pl.BlockSpec((T_BLK, B_BLK, G4), lambda t, b: (t, b, 0)),
            compiler_params=pltpu.CompilerParams(
                dimension_semantics=("parallel", "parallel"),
                vmem_limit_bytes=_vmem_limit(need1)),
        )(x, wih_t, bias)

    gates_x = _run_with_single_buffer_fallback(stage1)            # (T, B_pad, 4*H_pad)

    # --------------- Stage 2: recurrence over T-chunks + fused FC head -------
    T_CHUNK = _largest_divisor_leq(T, 32)      # gates_x never fully VMEM-resident
    B_BLK2 = min(B_pad, 128)                   # batch blocks shard across TCs (v7x)
    n_b, n_t = pl.cdiv(B_pad, B_BLK2), T // T_CHUNK
    # Full unroll only while one step's gate slab fits the vreg budget comfortably.
    unroll = T_CHUNK if B_BLK2 * G4 * 4 <= 256 * 1024 else min(T_CHUNK, 8)
    need2 = (2 * T_CHUNK * B_BLK2 * G4 * g_bytes + 2 * H_pad * G4 * w_bytes
             + 2 * H_pad * O_pad * 4 + 2 * O_pad * 4
             + 2 * B_BLK2 * O_pad * 4 + 2 * B_BLK2 * H_pad * 4)
    kernel = functools.partial(_recurrent_kernel, hidden_pad=H_pad,
                               t_chunk=T_CHUNK, unroll=unroll)

    def stage2(single_buffer):
        return pl.pallas_call(
            kernel,
            out_shape=jax.ShapeDtypeStruct((B_pad, O_pad), jnp.float32),
            grid_spec=pltpu.PrefetchScalarGridSpec(
                num_scalar_prefetch=0,
                grid=(n_b, n_t),
                in_specs=[
                    pl.BlockSpec((T_CHUNK, B_BLK2, G4), lambda b, t: (t, b, 0)),
                    _invariant_spec((H_pad, G4), single_buffer),
                    _invariant_spec((H_pad, O_pad), single_buffer),
                    _invariant_spec((1, O_pad), single_buffer),
                ],
                out_specs=pl.BlockSpec((B_BLK2, O_pad), lambda b, t: (b, 0)),
                scratch_shapes=[pltpu.VMEM((B_BLK2, H_pad), jnp.float32),
                                pltpu.VMEM((B_BLK2, H_pad), jnp.float32)],
            ),
            compiler_params=pltpu.CompilerParams(
                dimension_semantics=("parallel", "arbitrary"),
                vmem_limit_bytes=_vmem_limit(need2)),
        )(gates_x, whh_t, wfc_t, bfc)

    out_pad = _run_with_single_buffer_fallback(stage2)
    return out_pad[:B, :O].astype(x.dtype)


# ---------------------------------------------------------------------------
# Params + pure-JAX reference
# ---------------------------------------------------------------------------
def init_params(key, input_size, hidden_size, output_size):
    """Deterministic init mirroring PyTorch's uniform(-1/sqrt(H), 1/sqrt(H))."""
    ks = jax.random.split(key, 6)
    bound = 1.0 / jnp.sqrt(hidden_size)
    u = lambda k, shape: jax.random.uniform(k, shape, jnp.float32, -bound, bound)
    return {
        "w_ih": u(ks[0], (4 * hidden_size, input_size)),
        "w_hh": u(ks[1], (4 * hidden_size, hidden_size)),
        "b_ih": u(ks[2], (4 * hidden_size,)),
        "b_hh": u(ks[3], (4 * hidden_size,)),
        "w_fc": u(ks[4], (output_size, hidden_size)),
        "b_fc": u(ks[5], (output_size,)),
    }


def _reference_forward(x, params):
    """Pure-JAX reference of the same LSTM + FC for the correctness check."""
    w_ih, w_hh = params["w_ih"], params["w_hh"]
    b = params["b_ih"] + params["b_hh"]
    H = w_hh.shape[1]
    B, T, _ = x.shape
    h = jnp.zeros((B, H), jnp.float32)
    c = jnp.zeros((B, H), jnp.float32)
    for t in range(T):
        gates = x[:, t, :] @ w_ih.T + h @ w_hh.T + b
        i = jax.nn.sigmoid(gates[:, 0 * H:1 * H])
        f = jax.nn.sigmoid(gates[:, 1 * H:2 * H])
        g = jnp.tanh(gates[:, 2 * H:3 * H])
        o = jax.nn.sigmoid(gates[:, 3 * H:4 * H])
        c = f * c + i * g
        h = o * jnp.tanh(c)
    return h @ params["w_fc"].T + params["b_fc"]


if __name__ == "__main__":
    B, T, D_IN, H, O = 2, 8, 16, 32, 4

    key = jax.random.PRNGKey(0)
    kx, kp = jax.random.split(key)
    x = jax.random.normal(kx, (B, T, D_IN), jnp.float32)
    params = init_params(kp, D_IN, H, O)

    prepped = prepare_params(params)          # one-time weight prep (hoisted)
    out = simple_lstm_forward(x, prepped)
    out = jax.block_until_ready(out)

    ref = _reference_forward(x, params)
    assert out.shape == (B, O)
    # f32 matmul path -> tight tolerance; scale tolerance if using bf16 operands.
    assert jnp.allclose(out, ref, atol=1e-5, rtol=1e-5), "mismatch vs JAX reference"

    print("KERNEL_OK")
</pallas_src>

<mosaic_0001>
module attributes {stable_mosaic.version = 11 : i64} {
  func.func @_input_proj_kernel(%arg0: i32, %arg1: i32, %arg2: memref<8x8x16xf32, #tpu.memory_space<vmem>>, %arg3: memref<16x512xf32, #tpu.memory_space<vmem>>, %arg4: memref<1x512xf32, #tpu.memory_space<vmem>>, %arg5: memref<8x8x512xf32, #tpu.memory_space<vmem>>) attributes {dimension_semantics = [#tpu.dimension_semantics<parallel>, #tpu.dimension_semantics<parallel>], iteration_bounds = array<i64: 1, 1>, scalar_prefetch = 0 : i64, scratch_operands = 0 : i64, tpu.core_type = #tpu.core_type<tc>, window_params = [{transform_indices = @transform_0, window_bounds = array<i64: 8, 8, 16>}, {pipeline_mode = #tpu.pipeline_mode<synchronous>, transform_indices = @transform_1, window_bounds = array<i64: 16, 512>}, {pipeline_mode = #tpu.pipeline_mode<synchronous>, transform_indices = @transform_2, window_bounds = array<i64: 1, 512>}, {transform_indices = @transform_3, window_bounds = array<i64: 8, 8, 512>}]} {
    %c0 = arith.constant 0 : index
    %c0_0 = arith.constant 0 : index
    %0 = vector.load %arg3[%c0, %c0_0] : memref<16x512xf32, #tpu.memory_space<vmem>>, vector<16x512xf32>
    %c0_1 = arith.constant 0 : index
    %c0_2 = arith.constant 0 : index
    %c0_3 = arith.constant 0 : index
    %1 = vector.load %arg2[%c0_1, %c0_2, %c0_3] : memref<8x8x16xf32, #tpu.memory_space<vmem>>, vector<8x8x16xf32>
    %2 = tpu.transpose %1, [1, 0, 2] : vector<8x8x16xf32> -> vector<8x8x16xf32>
    %3 = vector.shape_cast %2 : vector<8x8x16xf32> to vector<64x16xf32>
    %cst = arith.constant dense<0.000000e+00> : vector<64x512xf32>
    %4 = tpu.matmul %3, %0, %cst {dimension_numbers = #tpu.dot_dimension_numbers<[1], [0], [0], [1], [0, 0, 1, 1], [], []>} : vector<64x16xf32>, vector<16x512xf32>, vector<64x512xf32> -> vector<64x512xf32>
    %c0_4 = arith.constant 0 : index
    %c0_5 = arith.constant 0 : index
    %5 = vector.load %arg4[%c0_4, %c0_5] : memref<1x512xf32, #tpu.memory_space<vmem>>, vector<1x512xf32>
    %6 = vector.broadcast %5 : vector<1x512xf32> to vector<64x512xf32>
    %7 = arith.addf %4, %6 : vector<64x512xf32>
    %8 = vector.shape_cast %7 : vector<64x512xf32> to vector<8x8x512xf32>
    %c0_6 = arith.constant 0 : index
    %c0_7 = arith.constant 0 : index
    %c0_8 = arith.constant 0 : index
    %9 = vector.load %arg5[%c0_6, %c0_7, %c0_8] : memref<8x8x512xf32, #tpu.memory_space<vmem>>, vector<8x8x512xf32>
    tpu.vector_store %arg5[%c0_6, %c0_7, %c0_8], %8 {strides = array<i32>} : memref<8x8x512xf32, #tpu.memory_space<vmem>>, vector<8x8x512xf32>,
    return
  }
  func.func @transform_0(%arg0: i32, %arg1: i32) -> (i32, i32, i32) {
    %c0_i32 = arith.constant 0 : i32
    %c0_i32_0 = arith.constant 0 : i32
    return %arg1, %arg0, %c0_i32 : i32, i32, i32
  }
  func.func @transform_1(%arg0: i32, %arg1: i32) -> (i32, i32) {
    %c0_i32 = arith.constant 0 : i32
    %c0_i32_0 = arith.constant 0 : i32
    %c0_i32_1 = arith.constant 0 : i32
    return %c0_i32, %c0_i32_0 : i32, i32
  }
  func.func @transform_2(%arg0: i32, %arg1: i32) -> (i32, i32) {
    %c0_i32 = arith.constant 0 : i32
    %c0_i32_0 = arith.constant 0 : i32
    %c0_i32_1 = arith.constant 0 : i32
    return %c0_i32, %c0_i32_0 : i32, i32
  }
  func.func @transform_3(%arg0: i32, %arg1: i32) -> (i32, i32, i32) {
    %c0_i32 = arith.constant 0 : i32
    %c0_i32_0 = arith.constant 0 : i32
    return %arg0, %arg1, %c0_i32 : i32, i32, i32
  }
}

module attributes {stable_mosaic.version = 11 : i64} {
  func.func @_input_proj_kernel(%arg0: i32, %arg1: i32, %arg2: memref<8x8x16xf32, #tpu.memory_space<vmem>>, %arg3: memref<16x512xf32, #tpu.memory_space<vmem>>, %arg4: memref<1x512xf32, #tpu.memory_space<vmem>>, %arg5: memref<8x8x512xf32, #tpu.memory_space<vmem>>) attributes {dimension_semantics = [#tpu.dimension_semantics<parallel>, #tpu.dimension_semantics<parallel>], iteration_bounds = array<i64: 1, 1>, scalar_prefetch = 0 : i64, scratch_operands = 0 : i64, tpu.core_type = #tpu.core_type<tc>, window_params = [{transform_indices = @transform_0, window_bounds = array<i64: 8, 8, 16>}, {pipeline_mode = #tpu.pipeline_mode<synchronous>, transform_indices = @transform_1, window_bounds = array<i64: 16, 512>}, {pipeline_mode = #tpu.pipeline_mode<synchronous>, transform_indices = @transform_2, window_bounds = array<i64: 1, 512>}, {transform_indices = @transform_3, window_bounds = array<i64: 8, 8, 512>}]} {
    %c0 = arith.constant 0 : index
    %c0_0 = arith.constant 0 : index
    %0 = vector.load %arg3[%c0, %c0_0] : memref<16x512xf32, #tpu.memory_space<vmem>>, vector<16x512xf32>
    %c0_1 = arith.constant 0 : index
    %c0_2 = arith.constant 0 : index
    %c0_3 = arith.constant 0 : index
    %1 = vector.load %arg2[%c0_1, %c0_2, %c0_3] : memref<8x8x16xf32, #tpu.memory_space<vmem>>, vector<8x8x16xf32>
    %2 = tpu.transpose %1, [1, 0, 2] : vector<8x8x16xf32> -> vector<8x8x16xf32>
    %3 = vector.shape_cast %2 : vector<8x8x16xf32> to vector<64x16xf32>
    %cst = arith.constant dense<0.000000e+00> : vector<64x512xf32>
    %4 = tpu.matmul %3, %0, %cst {dimension_numbers = #tpu.dot_dimension_numbers<[1], [0], [0], [1], [0, 0, 1, 1], [], []>} : vector<64x16xf32>, vector<16x512xf32>, vector<64x512xf32> -> vector<64x512xf32>
    %c0_4 = arith.constant 0 : index
    %c0_5 = arith.constant 0 : index
    %5 = vector.load %arg4[%c0_4, %c0_5] : memref<1x512xf32, #tpu.memory_space<vmem>>, vector<1x512xf32>
    %6 = vector.broadcast %5 : vector<1x512xf32> to vector<64x512xf32>
    %7 = arith.addf %4, %6 : vector<64x512xf32>
    %8 = vector.shape_cast %7 : vector<64x512xf32> to vector<8x8x512xf32>
    %c0_6 = arith.constant 0 : index
    %c0_7 = arith.constant 0 : index
    %c0_8 = arith.constant 0 : index
    %9 = vector.load %arg5[%c0_6, %c0_7, %c0_8] : memref<8x8x512xf32, #tpu.memory_space<vmem>>, vector<8x8x512xf32>
    tpu.vector_store %arg5[%c0_6, %c0_7, %c0_8], %8 {strides = array<i32>} : memref<8x8x512xf32, #tpu.memory_space<vmem>>, vector<8x8x512xf32>,
    return
  }
  func.func @transform_0(%arg0: i32, %arg1: i32) -> (i32, i32, i32) {
    %c0_i32 = arith.constant 0 : i32
    %c0_i32_0 = arith.constant 0 : i32
    return %arg1, %arg0, %c0_i32 : i32, i32, i32
  }
  func.func @transform_1(%arg0: i32, %arg1: i32) -> (i32, i32) {
    %c0_i32 = arith.constant 0 : i32
    %c0_i32_0 = arith.constant 0 : i32
    %c0_i32_1 = arith.constant 0 : i32
    return %c0_i32, %c0_i32_0 : i32, i32
  }
  func.func @transform_2(%arg0: i32, %arg1: i32) -> (i32, i32) {
    %c0_i32 = arith.constant 0 : i32
    %c0_i32_0 = arith.constant 0 : i32
    %c0_i32_1 = arith.constant 0 : i32
    return %c0_i32, %c0_i32_0 : i32, i32
  }
  func.func @transform_3(%arg0: i32, %arg1: i32) -> (i32, i32, i32) {
    %c0_i32 = arith.constant 0 : i32
    %c0_i32_0 = arith.constant 0 : i32
    return %arg0, %arg1, %c0_i32 : i32, i32, i32
  }
}

</mosaic_0001>

<llo_original>
// kernel: tpu_custom_call.1
$region0: #{tpu_custom_call.1}
  #allocation0 [shape = 'u32[]', space=smem, size = 0x4, offset = 0x4, fixed_abs, tag = 'smem constant byte address 0x4 - core index']
  #allocation1 [shape = 'u32[144,128]{1,0:T(1,128)}', space=vmem, size = 0x12000, scoped, tag = 'internal scratch']
  %s0 = inlined_call_operand.hbm [shape: f32[8,8,16], index: 0, kind: input, shape index: {}]
  %s1 = inlined_call_operand.hbm [shape: f32[16,512], index: 1, kind: input, shape index: {}]
  %s2 = inlined_call_operand.vmem [shape: f32[1,512], index: 2, kind: input, shape index: {}]
  %s3 = inlined_call_operand.hbm [shape: f32[8,8,512], index: 3, kind: output, shape index: {}]
  %s4 = sld [smem:[#allocation0]]
  $region30: #{tpu_custom_call.1} parent=0
    _
  %s6 = ssub.s32 1, %s4
  %s7 = scalar_select 0, %s6, %s4
  $region1: #{tpu_custom_call.1} parent=0
    #allocation2 [shape = 'u8[32768]{0}', space=vmem, size = 0x8000, scoped, tag = 'input window, operand 0, single buffered']
    #allocation3 [shape = 's32[1]{0}', space=sflag, size = 0x4, scoped, tag = 'scoped memory for tpu_custom_call.1']
    #allocation4 [shape = 's32[1]{0}', space=sflag, size = 0x4, scoped, tag = 'scoped memory for tpu_custom_call.1']
    #allocation5 [shape = 'u8[32768]{0}', space=vmem, size = 0x8000, scoped, tag = 'input window, operand 1, single buffered']
    #allocation6 [shape = 's32[1]{0}', space=sflag, size = 0x4, scoped, tag = 'scoped memory for tpu_custom_call.1']
    #allocation7 [shape = 'u8[131072]{0}', space=vmem, size = 0x20000, scoped, tag = 'output window, operand 0, single buffered']
    %8 = vsyncpa [#allocation3], 0
    %9 = vsyncpa [#allocation6], 0
    %10 = vsyncpa [#allocation4], 0
    // Predicated region
    $region2: #{tpu_custom_call.1} parent=1 // pred_check
      _
    $region3: #{tpu_custom_call.1} parent=1 // pred_check_branch
      %12 = sbr.rel (0) target = $region5
    $region4: #{tpu_custom_call.1} parent=1 // pred_region
      %s14 = ssub.s32 1024, 1024
      %15 = vsyncadd [#allocation3], %s14
      %s16 = sshll.u32 [#allocation2], 4
      %s17 = int_to_ptr.vmem [resolvable:$true] %s16
      %22 = dma.hbm_to_vmem [thread:$0]  %s0, 1024, %s17, [#allocation3], 128, 128, 8
    $region5: #{tpu_custom_call.1} parent=1 // pred_fallthru
      _
    // Predicated region
    $region6: #{tpu_custom_call.1} parent=1 // pred_check
      _
    $region7: #{tpu_custom_call.1} parent=1 // pred_check_branch
      %24 = sbr.rel (0) target = $region9
    $region8: #{tpu_custom_call.1} parent=1 // pred_region
      %s26 = ssub.s32 1024, 1024
      %27 = vsyncadd [#allocation6], %s26
      %s28 = sshll.u32 [#allocation5], 4
      %s29 = int_to_ptr.vmem [resolvable:$true] %s28
      %34 = dma.hbm_to_vmem [thread:$0]  %s1, 1024, %s29, [#allocation6], 512, 512, 32
    $region9: #{tpu_custom_call.1} parent=1 // pred_fallthru
      _
    // Predicated region
    $region10: #{tpu_custom_call.1} parent=1 // pred_check
      _
    $region11: #{tpu_custom_call.1} parent=1 // pred_check_branch
      %36 = sbr.rel (0) target = $region13
    $region12: #{tpu_custom_call.1} parent=1 // pred_region
      _
    $region13: #{tpu_custom_call.1} parent=1 // pred_fallthru
      _
    // Predicated region
    $region14: #{tpu_custom_call.1} parent=1 // pred_check
      _
    $region15: #{tpu_custom_call.1} parent=1 // pred_check_branch
      %38 = sbr.rel (0) target = $region17
    $region16: #{tpu_custom_call.1} parent=1 // pred_region
      %39 = dma.done [#allocation3], 1024
    $region17: #{tpu_custom_call.1} parent=1 // pred_fallthru
      _
    // Predicated region
    $region18: #{tpu_custom_call.1} parent=1 // pred_check
      _
    $region19: #{tpu_custom_call.1} parent=1 // pred_check_branch
      %41 = sbr.rel (0) target = $region21
    $region20: #{tpu_custom_call.1} parent=1 // pred_region
      %42 = dma.done [#allocation6], 1024
    $region21: #{tpu_custom_call.1} parent=1 // pred_fallthru
      _
    %v43 = vld [vmem:[#allocation5] sm:$0xff]
    %v44 = vld [vmem:[#allocation5 + $0x8] sm:$0xff]
    %v45 = vld [vmem:[#allocation5 + $0x10] sm:$0xff]
    %v46 = vld [vmem:[#allocation5 + $0x18] sm:$0xff]
    %v47 = vld [vmem:[#allocation5 + $0x20] sm:$0xff]
    %v48 = vld [vmem:[#allocation5 + $0x28] sm:$0xff]
    %v49 = vld [vmem:[#allocation5 + $0x30] sm:$0xff]
    %v50 = vld [vmem:[#allocation5 + $0x38] sm:$0xff]
    %v51 = vld [vmem:[#allocation2] sm:$0xff]
    %v52 = vld [vmem:[#allocation2 + $0x8] sm:$0xff]
    %v53 = vld [vmem:[#allocation2 + $0x10] sm:$0xff]
    %v54 = vld [vmem:[#allocation2 + $0x18] sm:$0xff]
    %v55 = vld [vmem:[#allocation2 + $0x20] sm:$0xff]
    %v56 = vld [vmem:[#allocation2 + $0x28] sm:$0xff]
    %v57 = vld [vmem:[#allocation2 + $0x30] sm:$0xff]
    %v58 = vld [vmem:[#allocation2 + $0x38] sm:$0xff]
    %v59 = vcombine.low %v51, %v53
    %v60 = vcombine.high %v51, %v53
    %v62 = vunpack.c.l.s4 1983009808
    %v63 = vunpack.c.0.s8 %v62
    %v64 = vlaneseq
    %v65 = vshrl.u32 %v64, 7
    %v66 = vsub.s32 %v63, %v65
    %v67 = vrot.slane %v59, %v66
    %v69 = vunpack.c.l.s4 1983009808
    %v70 = vunpack.c.0.s8 %v69
    %v71 = vlaneseq
    %v72 = vshrl.u32 %v71, 7
    %v73 = vsub.s32 %v70, %v72
    %v74 = vrot.slane %v60, %v73
    %v75 = vcombine.low %v52, %v54
    %v76 = vcombine.high %v52, %v54
    %v78 = vunpack.c.l.s4 1983009808
    %v79 = vunpack.c.0.s8 %v78
    %v80 = vlaneseq
    %v81 = vshrl.u32 %v80, 7
    %v82 = vsub.s32 %v79, %v81
    %v83 = vrot.slane %v75, %v82
    %v85 = vunpack.c.l.s4 1983009808
    %v86 = vunpack.c.0.s8 %v85
    %v87 = vlaneseq
    %v88 = vshrl.u32 %v87, 7
    %v89 = vsub.s32 %v86, %v88
    %v90 = vrot.slane %v76, %v89
    %v91 = vcombine.low %v55, %v57
    %v92 = vcombine.high %v55, %v57
    %v94 = vunpack.c.l.s4 1983009808
    %v95 = vunpack.c.0.s8 %v94
    %v96 = vlaneseq
    %v97 = vshrl.u32 %v96, 7
    %v98 = vsub.s32 %v95, %v97
    %v99 = vrot.slane %v91, %v98
    %v101 = vunpack.c.l.s4 1983009808
    %v102 = vunpack.c.0.s8 %v101
    %v103 = vlaneseq
    %v104 = vshrl.u32 %v103, 7
    %v105 = vsub.s32 %v102, %v104
    %v106 = vrot.slane %v92, %v105
    %v107 = vcombine.low %v56, %v58
    %v108 = vcombine.high %v56, %v58
    %v110 = vunpack.c.l.s4 1983009808
    %v111 = vunpack.c.0.s8 %v110
    %v112 = vlaneseq
    %v113 = vshrl.u32 %v112, 7
    %v114 = vsub.s32 %v111, %v113
    %v115 = vrot.slane %v107, %v114
    %v117 = vunpack.c.l.s4 1983009808
    %v118 = vunpack.c.0.s8 %v117
    %v119 = vlaneseq
    %v120 = vshrl.u32 %v119, 7
    %v121 = vsub.s32 %v118, %v120
    %v122 = vrot.slane %v108, %v121
    %v123 = vcombine.low %v67, %v83
    %v124 = vcombine.high %v67, %v83
    %v126 = vunpack.c.l.s4 1934713408
    %v127 = vunpack.c.0.s8 %v126
    %v128 = vlaneseq
    %v129 = vshrl.u32 %v128, 7
    %v130 = vsub.s32 %v127, %v129
    %v131 = vrot.slane %v123, %v130
    %v133 = vunpack.c.l.s4 1934713408
    %v134 = vunpack.c.0.s8 %v133
    %v135 = vlaneseq
    %v136 = vshrl.u32 %v135, 7
    %v137 = vsub.s32 %v134, %v136
    %v138 = vrot.slane %v124, %v137
    %v139 = vcombine.low %v74, %v90
    %v140 = vcombine.high %v74, %v90
    %v142 = vunpack.c.l.s4 1934713408
    %v143 = vunpack.c.0.s8 %v142
    %v144 = vlaneseq
    %v145 = vshrl.u32 %v144, 7
    %v146 = vsub.s32 %v143, %v145
    %v147 = vrot.slane %v139, %v146
    %v149 = vunpack.c.l.s4 1934713408
    %v150 = vunpack.c.0.s8 %v149
    %v151 = vlaneseq
    %v152 = vshrl.u32 %v151, 7
    %v153 = vsub.s32 %v150, %v152
    %v154 = vrot.slane %v140, %v153
    %v155 = vcombine.low %v99, %v115
    %v156 = vcombine.high %v99, %v115
    %v158 = vunpack.c.l.s4 1934713408
    %v159 = vunpack.c.0.s8 %v158
    %v160 = vlaneseq
    %v161 = vshrl.u32 %v160, 7
    %v162 = vsub.s32 %v159, %v161
    %v163 = vrot.slane %v155, %v162
    %v165 = vunpack.c.l.s4 1934713408
    %v166 = vunpack.c.0.s8 %v165
    %v167 = vlaneseq
    %v168 = vshrl.u32 %v167, 7
    %v169 = vsub.s32 %v166, %v168
    %v170 = vrot.slane %v156, %v169
    %v171 = vcombine.low %v106, %v122
    %v172 = vcombine.high %v106, %v122
    %v174 = vunpack.c.l.s4 1934713408
    %v175 = vunpack.c.0.s8 %v174
    %v176 = vlaneseq
    %v177 = vshrl.u32 %v176, 7
    %v178 = vsub.s32 %v175, %v177
    %v179 = vrot.slane %v171, %v178
    %v181 = vunpack.c.l.s4 1934713408
    %v182 = vunpack.c.0.s8 %v181
    %v183 = vlaneseq
    %v184 = vshrl.u32 %v183, 7
    %v185 = vsub.s32 %v182, %v184
    %v186 = vrot.slane %v172, %v185
    %v187 = vcombine.low %v131, %v163
    %v188 = vcombine.high %v131, %v163
    %v189 = vcombine.low %v138, %v170
    %v190 = vcombine.high %v138, %v170
    %v191 = vcombine.low %v147, %v179
    %v192 = vcombine.high %v147, %v179
    %v193 = vcombine.low %v154, %v186
    %v194 = vcombine.high %v154, %v186
    %v195 = vld [vmem:[%s2] sm:$0xf]
    %v197 = vlaneseq
    %v198 = vshrl.u32 %v197, 7
    %v199 = vsub.s32 0, %v198
    %v200 = vrot.slane %v195, %v199
    %v201 = vlaneseq
    %v202 = vshrl.u32 %v201, 7
    %v203 = vsub.s32 1, %v202
    %v204 = vrot.slane %v195, %v203
    %v205 = vlaneseq
    %v206 = vshrl.u32 %v205, 7
    %v207 = vsub.s32 2, %v206
    %v208 = vrot.slane %v195, %v207
    %v209 = vlaneseq
    %v210 = vshrl.u32 %v209, 7
    %v211 = vsub.s32 3, %v210
    %v212 = vrot.slane %v195, %v211
    %vm217 = vcmask 130048
    %v219 = vsel %vm217, %v187, 0
    %v222 = vsel %vm217, %v188, 0
    %v225 = vsel %vm217, %v189, 0
    %v228 = vsel %vm217, %v190, 0
    %v231 = vsel %vm217, %v191, 0
    %v234 = vsel %vm217, %v192, 0
    %v237 = vsel %vm217, %v193, 0
    %v240 = vsel %vm217, %v194, 0
    %242 = vmatprep.subr.mxu0 %v44
    %243 = vmatpush1.msra.mxu0 %v43
    %244 = vmatprep.subr.mxu0 %v48
    %245 = vmatpush1.msra.mxu0 %v47
    %246 = vmatprep.subr.mxu0 0.0
    %247 = vmatpush1.msra.mxu0 0.0
    %248 = vmatprep.subr.mxu0 0.0
    %249 = vmatpush1.msra.mxu0 0.0
    %250 = vmatprep.subr.mxu0 0.0
    %251 = vmatpush1.msra.mxu0 0.0
    %252 = vmatprep.subr.mxu0 0.0
    %253 = vmatpush1.msra.mxu0 0.0
    %254 = vmatprep.subr.mxu0 0.0
    %255 = vmatpush1.msra.mxu0 0.0
    %256 = vmatprep.subr.mxu0 0.0
    %257 = vmatpush1.msra.mxu0 0.0
    %258 = vmatprep.subr.mxu0 0.0
    %259 = vmatpush1.msra.mxu0 0.0
    %260 = vmatprep.subr.mxu0 0.0
    %261 = vmatpush1.msra.mxu0 0.0
    %262 = vmatprep.subr.mxu0 0.0
    %263 = vmatpush1.msra.mxu0 0.0
    %264 = vmatprep.subr.mxu0 0.0
    %265 = vmatpush1.msra.mxu0 0.0
    %266 = vmatprep.subr.mxu0 0.0
    %267 = vmatpush1.msra.mxu0 0.0
    %268 = vmatprep.subr.mxu0 0.0
    %269 = vmatpush1.msra.mxu0 0.0
    %270 = vmatprep.subr.mxu0 0.0
    %271 = vmatpush1.msra.mxu0 0.0
    %272 = vmatprep.subr.mxu0 0.0
    %273 = vmatpush1.msra.mxu0 0.0
    %274 = vmatprep.subr.mxu0 0.0
    %275 = vmatpush1.msra.mxu0 0.0
    %276 = vmatprep.subr.mxu0 0.0
    %277 = vmatpush1.msra.mxu0 0.0
    %278 = vmatprep.subr.mxu0 0.0
    %279 = vmatpush1.msra.mxu0 0.0
    %280 = vmatprep.subr.mxu0 0.0
    %281 = vmatpush1.msra.mxu0 0.0
    %282 = vmatprep.subr.mxu0 0.0
    %283 = vmatpush1.msra.mxu0 0.0
    %284 = vmatprep.subr.mxu0 0.0
    %285 = vmatpush1.msra.mxu0 0.0
    %286 = vmatprep.subr.mxu0 0.0
    %287 = vmatpush1.msra.mxu0 0.0
    %288 = vmatprep.subr.mxu0 0.0
    %289 = vmatpush1.msra.mxu0 0.0
    %290 = vmatprep.subr.mxu0 0.0
    %291 = vmatpush1.msra.mxu0 0.0
    %292 = vmatprep.subr.mxu0 0.0
    %293 = vmatpush1.msra.mxu0 0.0
    %294 = vmatprep.subr.mxu0 0.0
    %295 = vmatpush1.msra.mxu0 0.0
    %296 = vmatprep.subr.mxu0 0.0
    %297 = vmatpush1.msra.mxu0 0.0
    %298 = vmatprep.subr.mxu0 0.0
    %299 = vmatpush1.msra.mxu0 0.0
    %300 = vmatprep.subr.mxu0 0.0
    %301 = vmatpush1.msra.mxu0 0.0
    %302 = vmatprep.subr.mxu0 0.0
    %303 = vmatpush1.msra.mxu0 0.0
    %304 = vmatprep.subr.mxu0 0.0
    %305 = vmatpush1.msra.mxu0 0.0
    %306 = vmatprep.mubr.f32.mxu0 0.0
    %307 = vmatmul.mubr.f32.gmra.mrb[0].mxu0 %v219
    %v308 = vpop.f32.mrb[0].mxu0
    %v309 = vadd.f32 %v200, %v308
    %v310 = vpop.f32.mrb[0].mxu0
    %v311 = vadd.f32 %v204, %v310
    %312 = vmatprep.mubr.f32.mxu0 0.0
    %313 = vmatmul.mubr.f32.gmra.mrb[0].mxu0 %v222
    %v314 = vpop.f32.mrb[0].mxu0
    %v315 = vadd.f32 %v200, %v314
    %v316 = vpop.f32.mrb[0].mxu0
    %v317 = vadd.f32 %v204, %v316
    %318 = vmatprep.mubr.f32.mxu0 0.0
    %319 = vmatmul.mubr.f32.gmra.mrb[0].mxu0 %v225
    %v320 = vpop.f32.mrb[0].mxu0
    %v321 = vadd.f32 %v200, %v320
    %v322 = vpop.f32.mrb[0].mxu0
    %v323 = vadd.f32 %v204, %v322
    %324 = vmatprep.mubr.f32.mxu0 0.0
    %325 = vmatmul.mubr.f32.gmra.mrb[0].mxu0 %v228
    %v326 = vpop.f32.mrb[0].mxu0
    %v327 = vadd.f32 %v200, %v326
    %v328 = vpop.f32.mrb[0].mxu0
    %v329 = vadd.f32 %v204, %v328
    %330 = vmatprep.mubr.f32.mxu0 0.0
    %331 = vmatmul.mubr.f32.gmra.mrb[0].mxu0 %v231
    %v332 = vpop.f32.mrb[0].mxu0
    %v333 = vadd.f32 %v200, %v332
    %v334 = vpop.f32.mrb[0].mxu0
    %v335 = vadd.f32 %v204, %v334
    %336 = vmatprep.mubr.f32.mxu0 0.0
    %337 = vmatmul.mubr.f32.gmra.mrb[0].mxu0 %v234
    %v338 = vpop.f32.mrb[0].mxu0
    %v339 = vadd.f32 %v200, %v338
    %v340 = vpop.f32.mrb[0].mxu0
    %v341 = vadd.f32 %v204, %v340
    %342 = vmatprep.mubr.f32.mxu0 0.0
    %343 = vmatmul.mubr.f32.gmra.mrb[0].mxu0 %v237
    %v344 = vpop.f32.mrb[0].mxu0
    %v345 = vadd.f32 %v200, %v344
    %v346 = vpop.f32.mrb[0].mxu0
    %v347 = vadd.f32 %v204, %v346
    %348 = vmatprep.mubr.f32.mxu0 0.0
    %349 = vmatmul.mubr.f32.gmra.mrb[0].mxu0 %v240
    %v350 = vpop.f32.mrb[0].mxu0
    %v351 = vadd.f32 %v200, %v350
    %v352 = vpop.f32.mrb[0].mxu0
    %v353 = vadd.f32 %v204, %v352
    %354 = vdwg.mxu0
    %355 = vmatprep.subr.mxu0 %v46
    %356 = vmatpush1.msra.mxu0 %v45
    %357 = vmatprep.subr.mxu0 %v50
    %358 = vmatpush1.msra.mxu0 %v49
    %359 = vmatprep.subr.mxu0 0.0
    %360 = vmatpush1.msra.mxu0 0.0
    %361 = vmatprep.subr.mxu0 0.0
    %362 = vmatpush1.msra.mxu0 0.0
    %363 = vmatprep.subr.mxu0 0.0
    %364 = vmatpush1.msra.mxu0 0.0
    %365 = vmatprep.subr.mxu0 0.0
    %366 = vmatpush1.msra.mxu0 0.0
    %367 = vmatprep.subr.mxu0 0.0
    %368 = vmatpush1.msra.mxu0 0.0
    %369 = vmatprep.subr.mxu0 0.0
    %370 = vmatpush1.msra.mxu0 0.0
    %371 = vmatprep.subr.mxu0 0.0
    %372 = vmatpush1.msra.mxu0 0.0
    %373 = vmatprep.subr.mxu0 0.0
    %374 = vmatpush1.msra.mxu0 0.0
    %375 = vmatprep.subr.mxu0 0.0
    %376 = vmatpush1.msra.mxu0 0.0
    %377 = vmatprep.subr.mxu0 0.0
    %378 = vmatpush1.msra.mxu0 0.0
    %379 = vmatprep.subr.mxu0 0.0
    %380 = vmatpush1.msra.mxu0 0.0
    %381 = vmatprep.subr.mxu0 0.0
    %382 = vmatpush1.msra.mxu0 0.0
    %383 = vmatprep.subr.mxu0 0.0
    %384 = vmatpush1.msra.mxu0 0.0
    %385 = vmatprep.subr.mxu0 0.0
    %386 = vmatpush1.msra.mxu0 0.0
    %387 = vmatprep.subr.mxu0 0.0
    %388 = vmatpush1.msra.mxu0 0.0
    %389 = vmatprep.subr.mxu0 0.0
    %390 = vmatpush1.msra.mxu0 0.0
    %391 = vmatprep.subr.mxu0 0.0
    %392 = vmatpush1.msra.mxu0 0.0
    %393 = vmatprep.subr.mxu0 0.0
    %394 = vmatpush1.msra.mxu0 0.0
    %395 = vmatprep.subr.mxu0 0.0
    %396 = vmatpush1.msra.mxu0 0.0
    %397 = vmatprep.subr.mxu0 0.0
    %398 = vmatpush1.msra.mxu0 0.0
    %399 = vmatprep.subr.mxu0 0.0
    %400 = vmatpush1.msra.mxu0 0.0
    %401 = vmatprep.subr.mxu0 0.0
    %402 = vmatpush1.msra.mxu0 0.0
    %403 = vmatprep.subr.mxu0 0.0
    %404 = vmatpush1.msra.mxu0 0.0
    %405 = vmatprep.subr.mxu0 0.0
    %406 = vmatpush1.msra.mxu0 0.0
    %407 = vmatprep.subr.mxu0 0.0
    %408 = vmatpush1.msra.mxu0 0.0
    %409 = vmatprep.subr.mxu0 0.0
    %410 = vmatpush1.msra.mxu0 0.0
    %411 = vmatprep.subr.mxu0 0.0
    %412 = vmatpush1.msra.mxu0 0.0
    %413 = vmatprep.subr.mxu0 0.0
    %414 = vmatpush1.msra.mxu0 0.0
    %415 = vmatprep.subr.mxu0 0.0
    %416 = vmatpush1.msra.mxu0 0.0
    %417 = vmatprep.subr.mxu0 0.0
    %418 = vmatpush1.msra.mxu0 0.0
    %419 = vmatprep.mubr.f32.mxu0 0.0
    %420 = vmatmul.mubr.f32.gmra.mrb[0].mxu0 %v219
    %v421 = vpop.f32.mrb[0].mxu0
    %v422 = vadd.f32 %v208, %v421
    %v423 = vpop.f32.mrb[0].mxu0
    %v424 = vadd.f32 %v212, %v423
    %425 = vmatprep.mubr.f32.mxu0 0.0
    %426 = vmatmul.mubr.f32.gmra.mrb[0].mxu0 %v222
    %v427 = vpop.f32.mrb[0].mxu0
    %v428 = vadd.f32 %v208, %v427
    %v429 = vpop.f32.mrb[0].mxu0
    %v430 = vadd.f32 %v212, %v429
    %431 = vmatprep.mubr.f32.mxu0 0.0
    %432 = vmatmul.mubr.f32.gmra.mrb[0].mxu0 %v225
    %v433 = vpop.f32.mrb[0].mxu0
    %v434 = vadd.f32 %v208, %v433
    %v435 = vpop.f32.mrb[0].mxu0
    %v436 = vadd.f32 %v212, %v435
    %437 = vmatprep.mubr.f32.mxu0 0.0
    %438 = vmatmul.mubr.f32.gmra.mrb[0].mxu0 %v228
    %v439 = vpop.f32.mrb[0].mxu0
    %v440 = vadd.f32 %v208, %v439
    %v441 = vpop.f32.mrb[0].mxu0
    %v442 = vadd.f32 %v212, %v441
    %443 = vmatprep.mubr.f32.mxu0 0.0
    %444 = vmatmul.mubr.f32.gmra.mrb[0].mxu0 %v231
    %v445 = vpop.f32.mrb[0].mxu0
    %v446 = vadd.f32 %v208, %v445
    %v447 = vpop.f32.mrb[0].mxu0
    %v448 = vadd.f32 %v212, %v447
    %449 = vmatprep.mubr.f32.mxu0 0.0
    %450 = vmatmul.mubr.f32.gmra.mrb[0].mxu0 %v234
    %v451 = vpop.f32.mrb[0].mxu0
    %v452 = vadd.f32 %v208, %v451
    %v453 = vpop.f32.mrb[0].mxu0
    %v454 = vadd.f32 %v212, %v453
    %455 = vmatprep.mubr.f32.mxu0 0.0
    %456 = vmatmul.mubr.f32.gmra.mrb[0].mxu0 %v237
    %v457 = vpop.f32.mrb[0].mxu0
    %v458 = vadd.f32 %v208, %v457
    %v459 = vpop.f32.mrb[0].mxu0
    %v460 = vadd.f32 %v212, %v459
    %461 = vmatprep.mubr.f32.mxu0 0.0
    %462 = vmatmul.mubr.f32.gmra.mrb[0].mxu0 %v240
    %v463 = vpop.f32.mrb[0].mxu0
    %v464 = vadd.f32 %v208, %v463
    %v465 = vpop.f32.mrb[0].mxu0
    %v466 = vadd.f32 %v212, %v465
    %467 = vdwg.mxu0
    %468 = vst [vmem:[#allocation7] sm:$0xff] %v309
    %469 = vst [vmem:[#allocation7 + $0x8] sm:$0xff] %v311
    %470 = vst [vmem:[#allocation7 + $0x10] sm:$0xff] %v422
    %471 = vst [vmem:[#allocation7 + $0x18] sm:$0xff] %v424
    %472 = vst [vmem:[#allocation7 + $0x20] sm:$0xff] %v315
    %473 = vst [vmem:[#allocation7 + $0x28] sm:$0xff] %v317
    %474 = vst [vmem:[#allocation7 + $0x30] sm:$0xff] %v428
    %475 = vst [vmem:[#allocation7 + $0x38] sm:$0xff] %v430
    %476 = vst [vmem:[#allocation7 + $0x40] sm:$0xff] %v321
    %477 = vst [vmem:[#allocation7 + $0x48] sm:$0xff] %v323
    %478 = vst [vmem:[#allocation7 + $0x50] sm:$0xff] %v434
    %479 = vst [vmem:[#allocation7 + $0x58] sm:$0xff] %v436
    %480 = vst [vmem:[#allocation7 + $0x60] sm:$0xff] %v327
    %481 = vst [vmem:[#allocation7 + $0x68] sm:$0xff] %v329
    %482 = vst [vmem:[#allocation7 + $0x70] sm:$0xff] %v440
    %483 = vst [vmem:[#allocation7 + $0x78] sm:$0xff] %v442
    %484 = vst [vmem:[#allocation7 + $0x80] sm:$0xff] %v333
    %485 = vst [vmem:[#allocation7 + $0x88] sm:$0xff] %v335
    %486 = vst [vmem:[#allocation7 + $0x90] sm:$0xff] %v446
    %487 = vst [vmem:[#allocation7 + $0x98] sm:$0xff] %v448
    %488 = vst [vmem:[#allocation7 + $0xa0] sm:$0xff] %v339
    %489 = vst [vmem:[#allocation7 + $0xa8] sm:$0xff] %v341
    %490 = vst [vmem:[#allocation7 + $0xb0] sm:$0xff] %v452
    %491 = vst [vmem:[#allocation7 + $0xb8] sm:$0xff] %v454
    %492 = vst [vmem:[#allocation7 + $0xc0] sm:$0xff] %v345
    %493 = vst [vmem:[#allocation7 + $0xc8] sm:$0xff] %v347
    %494 = vst [vmem:[#allocation7 + $0xd0] sm:$0xff] %v458
    %495 = vst [vmem:[#allocation7 + $0xd8] sm:$0xff] %v460
    %496 = vst [vmem:[#allocation7 + $0xe0] sm:$0xff] %v351
    %497 = vst [vmem:[#allocation7 + $0xe8] sm:$0xff] %v353
    %498 = vst [vmem:[#allocation7 + $0xf0] sm:$0xff] %v464
    %499 = vst [vmem:[#allocation7 + $0xf8] sm:$0xff] %v466
    // Predicated region
    $region22: #{tpu_custom_call.1} parent=1 // pred_check
      _
    $region23: #{tpu_custom_call.1} parent=1 // pred_check_branch
      %501 = sbr.rel (0) target = $region25
    $region24: #{tpu_custom_call.1} parent=1 // pred_region
      %s503 = ssub.s32 4096, 4096
      %504 = vsyncadd [#allocation4], %s503
      %s505 = sshll.u32 [#allocation7], 4
      %s506 = int_to_ptr.vmem [resolvable:$true] %s505
      %511 = dma.vmem_to_hbm [thread:$0]  %s506, 4096, %s3, [#allocation4], 512, 512, 32
    $region25: #{tpu_custom_call.1} parent=1 // pred_fallthru
      _
    // Predicated region
    $region26: #{tpu_custom_call.1} parent=1 // pred_check
      _
    $region27: #{tpu_custom_call.1} parent=1 // pred_check_branch
      %513 = sbr.rel (0) target = $region29
    $region28: #{tpu_custom_call.1} parent=1 // pred_region
      %514 = dma.done [#allocation4], 4096
    $region29: #{tpu_custom_call.1} parent=1 // pred_fallthru
      _
    %515 = vsyncpa [#allocation3], 1
    %516 = vsyncpa [#allocation6], 1
    %517 = vsyncpa [#allocation4], 1

// kernel: tpu_custom_call.1
$region0: #{tpu_custom_call.1}
  #allocation0 [shape = 'u32[]', space=smem, size = 0x4, offset = 0x4, fixed_abs, tag = 'smem constant byte address 0x4 - core index']
  #allocation1 [shape = 'u32[144,128]{1,0:T(1,128)}', space=vmem, size = 0x12000, scoped, tag = 'internal scratch']
  %s0 = inlined_call_operand.hbm [shape: f32[8,8,16], index: 0, kind: input, shape index: {}]
  %s1 = inlined_call_operand.hbm [shape: f32[16,512], index: 1, kind: input, shape index: {}]
  %s2 = inlined_call_operand.vmem [shape: f32[1,512], index: 2, kind: input, shape index: {}]
  %s3 = inlined_call_operand.hbm [shape: f32[8,8,512], index: 3, kind: output, shape index: {}]
  %s4 = sld [smem:[#allocation0]]
  $region30: #{tpu_custom_call.1} parent=0
    _
  %s6 = ssub.s32 1, %s4
  %s7 = scalar_select 0, %s6, %s4
  $region1: #{tpu_custom_call.1} parent=0
    #allocation2 [shape = 'u8[32768]{0}', space=vmem, size = 0x8000, scoped, tag = 'input window, operand 0, single buffered']
    #allocation3 [shape = 's32[1]{0}', space=sflag, size = 0x4, scoped, tag = 'scoped memory for tpu_custom_call.1']
    #allocation4 [shape = 's32[1]{0}', space=sflag, size = 0x4, scoped, tag = 'scoped memory for tpu_custom_call.1']
    #allocation5 [shape = 'u8[32768]{0}', space=vmem, size = 0x8000, scoped, tag = 'input window, operand 1, single buffered']
    #allocation6 [shape = 's32[1]{0}', space=sflag, size = 0x4, scoped, tag = 'scoped memory for tpu_custom_call.1']
    #allocation7 [shape = 'u8[131072]{0}', space=vmem, size = 0x20000, scoped, tag = 'output window, operand 0, single buffered']
    %8 = vsyncpa [#allocation3], 0
    %9 = vsyncpa [#allocation6], 0
    %10 = vsyncpa [#allocation4], 0
    // Predicated region
    $region2: #{tpu_custom_call.1} parent=1 // pred_check
      _
    $region3: #{tpu_custom_call.1} parent=1 // pred_check_branch
      %12 = sbr.rel (0) target = $region5
    $region4: #{tpu_custom_call.1} parent=1 // pred_region
      %s14 = ssub.s32 1024, 1024
      %15 = vsyncadd [#allocation3], %s14
      %s16 = sshll.u32 [#allocation2], 4
      %s17 = int_to_ptr.vmem [resolvable:$true] %s16
      %22 = dma.hbm_to_vmem [thread:$0]  %s0, 1024, %s17, [#allocation3], 128, 128, 8
    $region5: #{tpu_custom_call.1} parent=1 // pred_fallthru
      _
    // Predicated region
    $region6: #{tpu_custom_call.1} parent=1 // pred_check
      _
    $region7: #{tpu_custom_call.1} parent=1 // pred_check_branch
      %24 = sbr.rel (0) target = $region9
    $region8: #{tpu_custom_call.1} parent=1 // pred_region
      %s26 = ssub.s32 1024, 1024
      %27 = vsyncadd [#allocation6], %s26
      %s28 = sshll.u32 [#allocation5], 4
      %s29 = int_to_ptr.vmem [resolvable:$true] %s28
      %34 = dma.hbm_to_vmem [thread:$0]  %s1, 1024, %s29, [#allocation6], 512, 512, 32
    $region9: #{tpu_custom_call.1} parent=1 // pred_fallthru
      _
    // Predicated region
    $region10: #{tpu_custom_call.1} parent=1 // pred_check
      _
    $region11: #{tpu_custom_call.1} parent=1 // pred_check_branch
      %36 = sbr.rel (0) target = $region13
    $region12: #{tpu_custom_call.1} parent=1 // pred_region
      _
    $region13: #{tpu_custom_call.1} parent=1 // pred_fallthru
      _
    // Predicated region
    $region14: #{tpu_custom_call.1} parent=1 // pred_check
      _
    $region15: #{tpu_custom_call.1} parent=1 // pred_check_branch
      %38 = sbr.rel (0) target = $region17
    $region16: #{tpu_custom_call.1} parent=1 // pred_region
      %39 = dma.done [#allocation3], 1024
    $region17: #{tpu_custom_call.1} parent=1 // pred_fallthru
      _
    // Predicated region
    $region18: #{tpu_custom_call.1} parent=1 // pred_check
      _
    $region19: #{tpu_custom_call.1} parent=1 // pred_check_branch
      %41 = sbr.rel (0) target = $region21
    $region20: #{tpu_custom_call.1} parent=1 // pred_region
      %42 = dma.done [#allocation6], 1024
    $region21: #{tpu_custom_call.1} parent=1 // pred_fallthru
      _
    %v43 = vld [vmem:[#allocation5] sm:$0xff]
    %v44 = vld [vmem:[#allocation5 + $0x8] sm:$0xff]
    %v45 = vld [vmem:[#allocation5 + $0x10] sm:$0xff]
    %v46 = vld [vmem:[#allocation5 + $0x18] sm:$0xff]
    %v47 = vld [vmem:[#allocation5 + $0x20] sm:$0xff]
    %v48 = vld [vmem:[#allocation5 + $0x28] sm:$0xff]
    %v49 = vld [vmem:[#allocation5 + $0x30] sm:$0xff]
    %v50 = vld [vmem:[#allocation5 + $0x38] sm:$0xff]
    %v51 = vld [vmem:[#allocation2] sm:$0xff]
    %v52 = vld [vmem:[#allocation2 + $0x8] sm:$0xff]
    %v53 = vld [vmem:[#allocation2 + $0x10] sm:$0xff]
    %v54 = vld [vmem:[#allocation2 + $0x18] sm:$0xff]
    %v55 = vld [vmem:[#allocation2 + $0x20] sm:$0xff]
    %v56 = vld [vmem:[#allocation2 + $0x28] sm:$0xff]
    %v57 = vld [vmem:[#allocation2 + $0x30] sm:$0xff]
    %v58 = vld [vmem:[#allocation2 + $0x38] sm:$0xff]
    %v59 = vcombine.low %v51, %v53
    %v60 = vcombine.high %v51, %v53
    %v62 = vunpack.c.l.s4 1983009808
    %v63 = vunpack.c.0.s8 %v62
    %v64 = vlaneseq
    %v65 = vshrl.u32 %v64, 7
    %v66 = vsub.s32 %v63, %v65
    %v67 = vrot.slane %v59, %v66
    %v69 = vunpack.c.l.s4 1983009808
    %v70 = vunpack.c.0.s8 %v69
    %v71 = vlaneseq
    %v72 = vshrl.u32 %v71, 7
    %v73 = vsub.s32 %v70, %v72
    %v74 = vrot.slane %v60, %v73
    %v75 = vcombine.low %v52, %v54
    %v76 = vcombine.high %v52, %v54
    %v78 = vunpack.c.l.s4 1983009808
    %v79 = vunpack.c.0.s8 %v78
    %v80 = vlaneseq
    %v81 = vshrl.u32 %v80, 7
    %v82 = vsub.s32 %v79, %v81
    %v83 = vrot.slane %v75, %v82
    %v85 = vunpack.c.l.s4 1983009808
    %v86 = vunpack.c.0.s8 %v85
    %v87 = vlaneseq
    %v88 = vshrl.u32 %v87, 7
    %v89 = vsub.s32 %v86, %v88
    %v90 = vrot.slane %v76, %v89
    %v91 = vcombine.low %v55, %v57
    %v92 = vcombine.high %v55, %v57
    %v94 = vunpack.c.l.s4 1983009808
    %v95 = vunpack.c.0.s8 %v94
    %v96 = vlaneseq
    %v97 = vshrl.u32 %v96, 7
    %v98 = vsub.s32 %v95, %v97
    %v99 = vrot.slane %v91, %v98
    %v101 = vunpack.c.l.s4 1983009808
    %v102 = vunpack.c.0.s8 %v101
    %v103 = vlaneseq
    %v104 = vshrl.u32 %v103, 7
    %v105 = vsub.s32 %v102, %v104
    %v106 = vrot.slane %v92, %v105
    %v107 = vcombine.low %v56, %v58
    %v108 = vcombine.high %v56, %v58
    %v110 = vunpack.c.l.s4 1983009808
    %v111 = vunpack.c.0.s8 %v110
    %v112 = vlaneseq
    %v113 = vshrl.u32 %v112, 7
    %v114 = vsub.s32 %v111, %v113
    %v115 = vrot.slane %v107, %v114
    %v117 = vunpack.c.l.s4 1983009808
    %v118 = vunpack.c.0.s8 %v117
    %v119 = vlaneseq
    %v120 = vshrl.u32 %v119, 7
    %v121 = vsub.s32 %v118, %v120
    %v122 = vrot.slane %v108, %v121
    %v123 = vcombine.low %v67, %v83
    %v124 = vcombine.high %v67, %v83
    %v126 = vunpack.c.l.s4 1934713408
    %v127 = vunpack.c.0.s8 %v126
    %v128 = vlaneseq
    %v129 = vshrl.u32 %v128, 7
    %v130 = vsub.s32 %v127, %v129
    %v131 = vrot.slane %v123, %v130
    %v133 = vunpack.c.l.s4 1934713408
    %v134 = vunpack.c.0.s8 %v133
    %v135 = vlaneseq
    %v136 = vshrl.u32 %v135, 7
    %v137 = vsub.s32 %v134, %v136
    %v138 = vrot.slane %v124, %v137
    %v139 = vcombine.low %v74, %v90
    %v140 = vcombine.high %v74, %v90
    %v142 = vunpack.c.l.s4 1934713408
    %v143 = vunpack.c.0.s8 %v142
    %v144 = vlaneseq
    %v145 = vshrl.u32 %v144, 7
    %v146 = vsub.s32 %v143, %v145
    %v147 = vrot.slane %v139, %v146
    %v149 = vunpack.c.l.s4 1934713408
    %v150 = vunpack.c.0.s8 %v149
    %v151 = vlaneseq
    %v152 = vshrl.u32 %v151, 7
    %v153 = vsub.s32 %v150, %v152
    %v154 = vrot.slane %v140, %v153
    %v155 = vcombine.low %v99, %v115
    %v156 = vcombine.high %v99, %v115
    %v158 = vunpack.c.l.s4 1934713408
    %v159 = vunpack.c.0.s8 %v158
    %v160 = vlaneseq
    %v161 = vshrl.u32 %v160, 7
    %v162 = vsub.s32 %v159, %v161
    %v163 = vrot.slane %v155, %v162
    %v165 = vunpack.c.l.s4 1934713408
    %v166 = vunpack.c.0.s8 %v165
    %v167 = vlaneseq
    %v168 = vshrl.u32 %v167, 7
    %v169 = vsub.s32 %v166, %v168
    %v170 = vrot.slane %v156, %v169
    %v171 = vcombine.low %v106, %v122
    %v172 = vcombine.high %v106, %v122
    %v174 = vunpack.c.l.s4 1934713408
    %v175 = vunpack.c.0.s8 %v174
    %v176 = vlaneseq
    %v177 = vshrl.u32 %v176, 7
    %v178 = vsub.s32 %v175, %v177
    %v179 = vrot.slane %v171, %v178
    %v181 = vunpack.c.l.s4 1934713408
    %v182 = vunpack.c.0.s8 %v181
    %v183 = vlaneseq
    %v184 = vshrl.u32 %v183, 7
    %v185 = vsub.s32 %v182, %v184
    %v186 = vrot.slane %v172, %v185
    %v187 = vcombine.low %v131, %v163
    %v188 = vcombine.high %v131, %v163
    %v189 = vcombine.low %v138, %v170
    %v190 = vcombine.high %v138, %v170
    %v191 = vcombine.low %v147, %v179
    %v192 = vcombine.high %v147, %v179
    %v193 = vcombine.low %v154, %v186
    %v194 = vcombine.high %v154, %v186
    %v195 = vld [vmem:[%s2] sm:$0xf]
    %v197 = vlaneseq
    %v198 = vshrl.u32 %v197, 7
    %v199 = vsub.s32 0, %v198
    %v200 = vrot.slane %v195, %v199
    %v201 = vlaneseq
    %v202 = vshrl.u32 %v201, 7
    %v203 = vsub.s32 1, %v202
    %v204 = vrot.slane %v195, %v203
    %v205 = vlaneseq
    %v206 = vshrl.u32 %v205, 7
    %v207 = vsub.s32 2, %v206
    %v208 = vrot.slane %v195, %v207
    %v209 = vlaneseq
    %v210 = vshrl.u32 %v209, 7
    %v211 = vsub.s32 3, %v210
    %v212 = vrot.slane %v195, %v211
    %vm217 = vcmask 130048
    %v219 = vsel %vm217, %v187, 0
    %v222 = vsel %vm217, %v188, 0
    %v225 = vsel %vm217, %v189, 0
    %v228 = vsel %vm217, %v190, 0
    %v231 = vsel %vm217, %v191, 0
    %v234 = vsel %vm217, %v192, 0
    %v237 = vsel %vm217, %v193, 0
    %v240 = vsel %vm217, %v194, 0
    %242 = vmatprep.subr.mxu0 %v44
    %243 = vmatpush1.msra.mxu0 %v43
    %244 = vmatprep.subr.mxu0 %v48
    %245 = vmatpush1.msra.mxu0 %v47
    %246 = vmatprep.subr.mxu0 0.0
    %247 = vmatpush1.msra.mxu0 0.0
    %248 = vmatprep.subr.mxu0 0.0
    %249 = vmatpush1.msra.mxu0 0.0
    %250 = vmatprep.subr.mxu0 0.0
    %251 = vmatpush1.msra.mxu0 0.0
    %252 = vmatprep.subr.mxu0 0.0
    %253 = vmatpush1.msra.mxu0 0.0
    %254 = vmatprep.subr.mxu0 0.0
    %255 = vmatpush1.msra.mxu0 0.0
    %256 = vmatprep.subr.mxu0 0.0
    %257 = vmatpush1.msra.mxu0 0.0
    %258 = vmatprep.subr.mxu0 0.0
    %259 = vmatpush1.msra.mxu0 0.0
    %260 = vmatprep.subr.mxu0 0.0
    %261 = vmatpush1.msra.mxu0 0.0
    %262 = vmatprep.subr.mxu0 0.0
    %263 = vmatpush1.msra.mxu0 0.0
    %264 = vmatprep.subr.mxu0 0.0
    %265 = vmatpush1.msra.mxu0 0.0
    %266 = vmatprep.subr.mxu0 0.0
    %267 = vmatpush1.msra.mxu0 0.0
    %268 = vmatprep.subr.mxu0 0.0
    %269 = vmatpush1.msra.mxu0 0.0
    %270 = vmatprep.subr.mxu0 0.0
    %271 = vmatpush1.msra.mxu0 0.0
    %272 = vmatprep.subr.mxu0 0.0
    %273 = vmatpush1.msra.mxu0 0.0
    %274 = vmatprep.subr.mxu0 0.0
    %275 = vmatpush1.msra.mxu0 0.0
    %276 = vmatprep.subr.mxu0 0.0
    %277 = vmatpush1.msra.mxu0 0.0
    %278 = vmatprep.subr.mxu0 0.0
    %279 = vmatpush1.msra.mxu0 0.0
    %280 = vmatprep.subr.mxu0 0.0
    %281 = vmatpush1.msra.mxu0 0.0
    %282 = vmatprep.subr.mxu0 0.0
    %283 = vmatpush1.msra.mxu0 0.0
    %284 = vmatprep.subr.mxu0 0.0
    %285 = vmatpush1.msra.mxu0 0.0
    %286 = vmatprep.subr.mxu0 0.0
    %287 = vmatpush1.msra.mxu0 0.0
    %288 = vmatprep.subr.mxu0 0.0
    %289 = vmatpush1.msra.mxu0 0.0
    %290 = vmatprep.subr.mxu0 0.0
    %291 = vmatpush1.msra.mxu0 0.0
    %292 = vmatprep.subr.mxu0 0.0
    %293 = vmatpush1.msra.mxu0 0.0
    %294 = vmatprep.subr.mxu0 0.0
    %295 = vmatpush1.msra.mxu0 0.0
    %296 = vmatprep.subr.mxu0 0.0
    %297 = vmatpush1.msra.mxu0 0.0
    %298 = vmatprep.subr.mxu0 0.0
    %299 = vmatpush1.msra.mxu0 0.0
    %300 = vmatprep.subr.mxu0 0.0
    %301 = vmatpush1.msra.mxu0 0.0
    %302 = vmatprep.subr.mxu0 0.0
    %303 = vmatpush1.msra.mxu0 0.0
    %304 = vmatprep.subr.mxu0 0.0
    %305 = vmatpush1.msra.mxu0 0.0
    %306 = vmatprep.mubr.f32.mxu0 0.0
    %307 = vmatmul.mubr.f32.gmra.mrb[0].mxu0 %v219
    %v308 = vpop.f32.mrb[0].mxu0
    %v309 = vadd.f32 %v200, %v308
    %v310 = vpop.f32.mrb[0].mxu0
    %v311 = vadd.f32 %v204, %v310
    %312 = vmatprep.mubr.f32.mxu0 0.0
    %313 = vmatmul.mubr.f32.gmra.mrb[0].mxu0 %v222
    %v314 = vpop.f32.mrb[0].mxu0
    %v315 = vadd.f32 %v200, %v314
    %v316 = vpop.f32.mrb[0].mxu0
    %v317 = vadd.f32 %v204, %v316
    %318 = vmatprep.mubr.f32.mxu0 0.0
    %319 = vmatmul.mubr.f32.gmra.mrb[0].mxu0 %v225
    %v320 = vpop.f32.mrb[0].mxu0
    %v321 = vadd.f32 %v200, %v320
    %v322 = vpop.f32.mrb[0].mxu0
    %v323 = vadd.f32 %v204, %v322
    %324 = vmatprep.mubr.f32.mxu0 0.0
    %325 = vmatmul.mubr.f32.gmra.mrb[0].mxu0 %v228
    %v326 = vpop.f32.mrb[0].mxu0
    %v327 = vadd.f32 %v200, %v326
    %v328 = vpop.f32.mrb[0].mxu0
    %v329 = vadd.f32 %v204, %v328
    %330 = vmatprep.mubr.f32.mxu0 0.0
    %331 = vmatmul.mubr.f32.gmra.mrb[0].mxu0 %v231
    %v332 = vpop.f32.mrb[0].mxu0
    %v333 = vadd.f32 %v200, %v332
    %v334 = vpop.f32.mrb[0].mxu0
    %v335 = vadd.f32 %v204, %v334
    %336 = vmatprep.mubr.f32.mxu0 0.0
    %337 = vmatmul.mubr.f32.gmra.mrb[0].mxu0 %v234
    %v338 = vpop.f32.mrb[0].mxu0
    %v339 = vadd.f32 %v200, %v338
    %v340 = vpop.f32.mrb[0].mxu0
    %v341 = vadd.f32 %v204, %v340
    %342 = vmatprep.mubr.f32.mxu0 0.0
    %343 = vmatmul.mubr.f32.gmra.mrb[0].mxu0 %v237
    %v344 = vpop.f32.mrb[0].mxu0
    %v345 = vadd.f32 %v200, %v344
    %v346 = vpop.f32.mrb[0].mxu0
    %v347 = vadd.f32 %v204, %v346
    %348 = vmatprep.mubr.f32.mxu0 0.0
    %349 = vmatmul.mubr.f32.gmra.mrb[0].mxu0 %v240
    %v350 = vpop.f32.mrb[0].mxu0
    %v351 = vadd.f32 %v200, %v350
    %v352 = vpop.f32.mrb[0].mxu0
    %v353 = vadd.f32 %v204, %v352
    %354 = vdwg.mxu0
    %355 = vmatprep.subr.mxu0 %v46
    %356 = vmatpush1.msra.mxu0 %v45
    %357 = vmatprep.subr.mxu0 %v50
    %358 = vmatpush1.msra.mxu0 %v49
    %359 = vmatprep.subr.mxu0 0.0
    %360 = vmatpush1.msra.mxu0 0.0
    %361 = vmatprep.subr.mxu0 0.0
    %362 = vmatpush1.msra.mxu0 0.0
    %363 = vmatprep.subr.mxu0 0.0
    %364 = vmatpush1.msra.mxu0 0.0
    %365 = vmatprep.subr.mxu0 0.0
    %366 = vmatpush1.msra.mxu0 0.0
    %367 = vmatprep.subr.mxu0 0.0
    %368 = vmatpush1.msra.mxu0 0.0
    %369 = vmatprep.subr.mxu0 0.0
    %370 = vmatpush1.msra.mxu0 0.0
    %371 = vmatprep.subr.mxu0 0.0
    %372 = vmatpush1.msra.mxu0 0.0
    %373 = vmatprep.subr.mxu0 0.0
    %374 = vmatpush1.msra.mxu0 0.0
    %375 = vmatprep.subr.mxu0 0.0
    %376 = vmatpush1.msra.mxu0 0.0
    %377 = vmatprep.subr.mxu0 0.0
    %378 = vmatpush1.msra.mxu0 0.0
    %379 = vmatprep.subr.mxu0 0.0
    %380 = vmatpush1.msra.mxu0 0.0
    %381 = vmatprep.subr.mxu0 0.0
    %382 = vmatpush1.msra.mxu0 0.0
    %383 = vmatprep.subr.mxu0 0.0
    %384 = vmatpush1.msra.mxu0 0.0
    %385 = vmatprep.subr.mxu0 0.0
    %386 = vmatpush1.msra.mxu0 0.0
    %387 = vmatprep.subr.mxu0 0.0
    %388 = vmatpush1.msra.mxu0 0.0
    %389 = vmatprep.subr.mxu0 0.0
    %390 = vmatpush1.msra.mxu0 0.0
    %391 = vmatprep.subr.mxu0 0.0
    %392 = vmatpush1.msra.mxu0 0.0
    %393 = vmatprep.subr.mxu0 0.0
    %394 = vmatpush1.msra.mxu0 0.0
    %395 = vmatprep.subr.mxu0 0.0
    %396 = vmatpush1.msra.mxu0 0.0
    %397 = vmatprep.subr.mxu0 0.0
    %398 = vmatpush1.msra.mxu0 0.0
    %399 = vmatprep.subr.mxu0 0.0
    %400 = vmatpush1.msra.mxu0 0.0
    %401 = vmatprep.subr.mxu0 0.0
    %402 = vmatpush1.msra.mxu0 0.0
    %403 = vmatprep.subr.mxu0 0.0
    %404 = vmatpush1.msra.mxu0 0.0
    %405 = vmatprep.subr.mxu0 0.0
    %406 = vmatpush1.msra.mxu0 0.0
    %407 = vmatprep.subr.mxu0 0.0
    %408 = vmatpush1.msra.mxu0 0.0
    %409 = vmatprep.subr.mxu0 0.0
    %410 = vmatpush1.msra.mxu0 0.0
    %411 = vmatprep.subr.mxu0 0.0
    %412 = vmatpush1.msra.mxu0 0.0
    %413 = vmatprep.subr.mxu0 0.0
    %414 = vmatpush1.msra.mxu0 0.0
    %415 = vmatprep.subr.mxu0 0.0
    %416 = vmatpush1.msra.mxu0 0.0
    %417 = vmatprep.subr.mxu0 0.0
    %418 = vmatpush1.msra.mxu0 0.0
    %419 = vmatprep.mubr.f32.mxu0 0.0
    %420 = vmatmul.mubr.f32.gmra.mrb[0].mxu0 %v219
    %v421 = vpop.f32.mrb[0].mxu0
    %v422 = vadd.f32 %v208, %v421
    %v423 = vpop.f32.mrb[0].mxu0
    %v424 = vadd.f32 %v212, %v423
    %425 = vmatprep.mubr.f32.mxu0 0.0
    %426 = vmatmul.mubr.f32.gmra.mrb[0].mxu0 %v222
    %v427 = vpop.f32.mrb[0].mxu0
    %v428 = vadd.f32 %v208, %v427
    %v429 = vpop.f32.mrb[0].mxu0
    %v430 = vadd.f32 %v212, %v429
    %431 = vmatprep.mubr.f32.mxu0 0.0
    %432 = vmatmul.mubr.f32.gmra.mrb[0].mxu0 %v225
    %v433 = vpop.f32.mrb[0].mxu0
    %v434 = vadd.f32 %v208, %v433
    %v435 = vpop.f32.mrb[0].mxu0
    %v436 = vadd.f32 %v212, %v435
    %437 = vmatprep.mubr.f32.mxu0 0.0
    %438 = vmatmul.mubr.f32.gmra.mrb[0].mxu0 %v228
    %v439 = vpop.f32.mrb[0].mxu0
    %v440 = vadd.f32 %v208, %v439
    %v441 = vpop.f32.mrb[0].mxu0
    %v442 = vadd.f32 %v212, %v441
    %443 = vmatprep.mubr.f32.mxu0 0.0
    %444 = vmatmul.mubr.f32.gmra.mrb[0].mxu0 %v231
    %v445 = vpop.f32.mrb[0].mxu0
    %v446 = vadd.f32 %v208, %v445
    %v447 = vpop.f32.mrb[0].mxu0
    %v448 = vadd.f32 %v212, %v447
    %449 = vmatprep.mubr.f32.mxu0 0.0
    %450 = vmatmul.mubr.f32.gmra.mrb[0].mxu0 %v234
    %v451 = vpop.f32.mrb[0].mxu0
    %v452 = vadd.f32 %v208, %v451
    %v453 = vpop.f32.mrb[0].mxu0
    %v454 = vadd.f32 %v212, %v453
    %455 = vmatprep.mubr.f32.mxu0 0.0
    %456 = vmatmul.mubr.f32.gmra.mrb[0].mxu0 %v237
    %v457 = vpop.f32.mrb[0].mxu0
    %v458 = vadd.f32 %v208, %v457
    %v459 = vpop.f32.mrb[0].mxu0
    %v460 = vadd.f32 %v212, %v459
    %461 = vmatprep.mubr.f32.mxu0 0.0
    %462 = vmatmul.mubr.f32.gmra.mrb[0].mxu0 %v240
    %v463 = vpop.f32.mrb[0].mxu0
    %v464 = vadd.f32 %v208, %v463
    %v465 = vpop.f32.mrb[0].mxu0
    %v466 = vadd.f32 %v212, %v465
    %467 = vdwg.mxu0
    %468 = vst [vmem:[#allocation7] sm:$0xff] %v309
    %469 = vst [vmem:[#allocation7 + $0x8] sm:$0xff] %v311
    %470 = vst [vmem:[#allocation7 + $0x10] sm:$0xff] %v422
    %471 = vst [vmem:[#allocation7 + $0x18] sm:$0xff] %v424
    %472 = vst [vmem:[#allocation7 + $0x20] sm:$0xff] %v315
    %473 = vst [vmem:[#allocation7 + $0x28] sm:$0xff] %v317
    %474 = vst [vmem:[#allocation7 + $0x30] sm:$0xff] %v428
    %475 = vst [vmem:[#allocation7 + $0x38] sm:$0xff] %v430
    %476 = vst [vmem:[#allocation7 + $0x40] sm:$0xff] %v321
    %477 = vst [vmem:[#allocation7 + $0x48] sm:$0xff] %v323
    %478 = vst [vmem:[#allocation7 + $0x50] sm:$0xff] %v434
    %479 = vst [vmem:[#allocation7 + $0x58] sm:$0xff] %v436
    %480 = vst [vmem:[#allocation7 + $0x60] sm:$0xff] %v327
    %481 = vst [vmem:[#allocation7 + $0x68] sm:$0xff] %v329
    %482 = vst [vmem:[#allocation7 + $0x70] sm:$0xff] %v440
    %483 = vst [vmem:[#allocation7 + $0x78] sm:$0xff] %v442
    %484 = vst [vmem:[#allocation7 + $0x80] sm:$0xff] %v333
    %485 = vst [vmem:[#allocation7 + $0x88] sm:$0xff] %v335
    %486 = vst [vmem:[#allocation7 + $0x90] sm:$0xff] %v446
    %487 = vst [vmem:[#allocation7 + $0x98] sm:$0xff] %v448
    %488 = vst [vmem:[#allocation7 + $0xa0] sm:$0xff] %v339
    %489 = vst [vmem:[#allocation7 + $0xa8] sm:$0xff] %v341
    %490 = vst [vmem:[#allocation7 + $0xb0] sm:$0xff] %v452
    %491 = vst [vmem:[#allocation7 + $0xb8] sm:$0xff] %v454
    %492 = vst [vmem:[#allocation7 + $0xc0] sm:$0xff] %v345
    %493 = vst [vmem:[#allocation7 + $0xc8] sm:$0xff] %v347
    %494 = vst [vmem:[#allocation7 + $0xd0] sm:$0xff] %v458
    %495 = vst [vmem:[#allocation7 + $0xd8] sm:$0xff] %v460
    %496 = vst [vmem:[#allocation7 + $0xe0] sm:$0xff] %v351
    %497 = vst [vmem:[#allocation7 + $0xe8] sm:$0xff] %v353
    %498 = vst [vmem:[#allocation7 + $0xf0] sm:$0xff] %v464
    %499 = vst [vmem:[#allocation7 + $0xf8] sm:$0xff] %v466
    // Predicated region
    $region22: #{tpu_custom_call.1} parent=1 // pred_check
      _
    $region23: #{tpu_custom_call.1} parent=1 // pred_check_branch
      %501 = sbr.rel (0) target = $region25
    $region24: #{tpu_custom_call.1} parent=1 // pred_region
      %s503 = ssub.s32 4096, 4096
      %504 = vsyncadd [#allocation4], %s503
      %s505 = sshll.u32 [#allocation7], 4
      %s506 = int_to_ptr.vmem [resolvable:$true] %s505
      %511 = dma.vmem_to_hbm [thread:$0]  %s506, 4096, %s3, [#allocation4], 512, 512, 32
    $region25: #{tpu_custom_call.1} parent=1 // pred_fallthru
      _
    // Predicated region
    $region26: #{tpu_custom_call.1} parent=1 // pred_check
      _
    $region27: #{tpu_custom_call.1} parent=1 // pred_check_branch
      %513 = sbr.rel (0) target = $region29
    $region28: #{tpu_custom_call.1} parent=1 // pred_region
      %514 = dma.done [#allocation4], 4096
    $region29: #{tpu_custom_call.1} parent=1 // pred_fallthru
      _
    %515 = vsyncpa [#allocation3], 1
    %516 = vsyncpa [#allocation6], 1
    %517 = vsyncpa [#allocation4], 1

</llo_original>
